<compile_context>
chip_gen: v7x
topology: tpu7x:2x2x1
jax: 0.10.0
libtpu: 0.0.40
codegen_flags: <defaults>
</compile_context>

<pallas_src>
import functools
import math

import jax
import jax.numpy as jnp
from jax.experimental import pallas as pl
from jax.experimental.pallas import tpu as pltpu


_N_BUF = 16                 # gather-DMA semaphores per buffer slot (round-robin)
_RESIDENT_MAX_VOCAB = 2048  # one-hot build is O(tile*vocab) VPU work: cap it
_DEFAULT_VMEM = 64 * 1024 * 1024   # conservative fallback (v7x per-TC VMEM)


def _round_up(x, m):
    return ((x + m - 1) // m) * m


def _vmem_capacity_bytes():
    """Per-core VMEM capacity; conservative fallback if the query fails."""
    try:
        info = pltpu.get_tpu_info()
        for attr in ("vmem_capacity_bytes", "vmem_size_bytes", "vmem_bytes"):
            val = getattr(info, attr, None)
            if val:
                return int(val)
    except Exception:  # defensive: sizing only, never a correctness issue
        pass
    return _DEFAULT_VMEM


# ------------------------------ resident path ------------------------------

def _resident_kernel(ids_ref, tab_ref, out_ref, *, scale):
    # ids_ref: (T, 1) int32; tab_ref: (vocab, d_model) resident in VMEM;
    # out_ref: (T, d_model).
    t_tokens = out_ref.shape[0]
    vocab = tab_ref.shape[0]
    col = jax.lax.broadcasted_iota(jnp.int32, (t_tokens, vocab), 1)
    onehot = (ids_ref[...] == col).astype(tab_ref.dtype)
    rows = jnp.dot(onehot, tab_ref[...], preferred_element_type=jnp.float32)
    out_ref[...] = (rows * scale).astype(out_ref.dtype)


def _embedding_resident(ids_flat, table, *, tile, scale, vmem_limit):
    n_padded = ids_flat.shape[0]
    vocab, d_model = table.shape
    n_tiles = n_padded // tile
    ids_2d = ids_flat.reshape(n_padded, 1)
    itemsize = table.dtype.itemsize

    cost = pl.CostEstimate(
        flops=int(2 * n_padded * vocab * d_model),
        transcendentals=0,
        bytes_accessed=int(vocab * d_model * itemsize
                           + n_padded * d_model * itemsize + n_padded * 4),
    )
    kernel = functools.partial(_resident_kernel, scale=scale)
    return pl.pallas_call(
        kernel,
        out_shape=jax.ShapeDtypeStruct((n_padded, d_model), table.dtype),
        grid_spec=pltpu.PrefetchScalarGridSpec(
            num_scalar_prefetch=0,
            grid=(n_tiles,),
            in_specs=[
                pl.BlockSpec((tile, 1), lambda i: (i, 0)),
                # Constant block index -> table DMA'd from HBM exactly once,
                # then resident in VMEM for every token tile.
                pl.BlockSpec((vocab, d_model), lambda i: (0, 0)),
            ],
            out_specs=pl.BlockSpec((tile, d_model), lambda i: (i, 0)),
        ),
        compiler_params=pltpu.CompilerParams(
            dimension_semantics=("parallel",),   # v7x megacore can split tiles
            vmem_limit_bytes=int(vmem_limit),
        ),
        cost_estimate=cost,
    )(ids_2d, table)


# ------------------------------- gather path -------------------------------

def _gather_kernel(ids_ref, tab_hbm, out_ref, rows_vmem, sems, *, scale, tile):
    # ids_ref  : (n_padded,) int32 in SMEM (scalar prefetch)
    # tab_hbm  : (vocab, d_model), left in HBM
    # rows_vmem: (2, tile, d_model) VMEM scratch (cross-step double buffer)
    # sems     : (2, _N_BUF) DMA semaphores (one independent bank per slot)
    step = pl.program_id(0)
    n_steps = pl.num_programs(0)
    slot = step & 1

    def issue(tile_idx, slot_idx):
        base = tile_idx * tile

        def body(t, carry):
            tok = ids_ref[base + t]
            pltpu.make_async_copy(
                tab_hbm.at[tok],
                rows_vmem.at[slot_idx, t],
                sems.at[slot_idx, t & (_N_BUF - 1)],
            ).start()
            return carry

        jax.lax.fori_loop(0, tile, body, 0, unroll=8)

    def drain(slot_idx):
        # Row-sized waits exactly mirroring the starts (same semaphore, same
        # copy size), so the slot's semaphore bank is back at zero before the
        # slot is reused by a later step's prefetch.
        def body(t, carry):
            pltpu.make_async_copy(
                tab_hbm.at[0],
                rows_vmem.at[slot_idx, t],
                sems.at[slot_idx, t & (_N_BUF - 1)],
            ).wait()
            return carry

        jax.lax.fori_loop(0, tile, body, 0, unroll=8)

    # Prologue: the very first tile has nothing prefetched for it.
    @pl.when(step == 0)
    def _():
        issue(0, 0)

    # Cross-step prefetch: start tile step+1's row gathers into the *other*
    # slot before draining this one, so their HBM latency hides under this
    # step's drain + scale + store.  (All SMEM id reads therefore happen
    # before the first .wait().)
    @pl.when(step + 1 < n_steps)
    def _():
        issue(step + 1, 1 - slot)

    drain(slot)
    out_ref[...] = (rows_vmem[slot] * scale).astype(out_ref.dtype)


def _embedding_gather(ids_flat, table, *, tile, scale, vmem_limit):
    n_padded = ids_flat.shape[0]
    vocab, d_model = table.shape
    n_tiles = n_padded // tile
    itemsize = table.dtype.itemsize

    cost = pl.CostEstimate(
        flops=int(n_padded * d_model),
        transcendentals=0,
        bytes_accessed=int(2 * n_padded * d_model * itemsize + n_padded * 4),
    )
    kernel = functools.partial(_gather_kernel, scale=scale, tile=tile)
    return pl.pallas_call(
        kernel,
        out_shape=jax.ShapeDtypeStruct((n_padded, d_model), table.dtype),
        grid_spec=pltpu.PrefetchScalarGridSpec(
            num_scalar_prefetch=1,
            grid=(n_tiles,),
            in_specs=[pl.BlockSpec(memory_space=pl.ANY)],
            out_specs=pl.BlockSpec((tile, d_model), lambda i, ids: (i, 0)),
            scratch_shapes=[
                pltpu.VMEM((2, tile, d_model), table.dtype),
                pltpu.SemaphoreType.DMA((2, _N_BUF)),
            ],
        ),
        compiler_params=pltpu.CompilerParams(
            # Cross-step prefetch imposes a step i -> i+1 dependence, so this
            # axis must run strictly sequentially (never sharded across TCs).
            dimension_semantics=("arbitrary",),
            vmem_limit_bytes=int(vmem_limit),
        ),
        cost_estimate=cost,
    )(ids_flat, table)


# -------------------------------- wrapper ----------------------------------

def embedding_forward(x, table, *, token_tile=512, force_gather=False):
    """x: int token ids, any shape; table: (vocab, d_model).

    Returns table[x] * sqrt(d_model) with shape x.shape + (d_model,).
    (Lane-dense stores assume d_model is a multiple of 128; other sizes are
    correct but use masked partial stores.)
    """
    vocab, d_model = table.shape
    orig_shape = tuple(x.shape)
    n_tokens = 1
    for s in orig_shape:
        n_tokens *= int(s)
    scale = float(math.sqrt(d_model))
    itemsize = table.dtype.itemsize
    table_bytes = vocab * d_model * itemsize

    ids = x.reshape(n_tokens).astype(jnp.int32)
    # nn.Embedding raises on out-of-range ids; clamp so a bad id can never
    # drive an out-of-bounds gather on device.
    ids = jnp.clip(ids, 0, vocab - 1)

    # --- generation-aware sizing -------------------------------------------
    vmem_cap = _vmem_capacity_bytes()
    # Gather path holds ~4 (tile, d_model) buffers (2x pipelined out block +
    # 2x prefetch scratch); keep that within ~1/3 of VMEM so a fused model
    # still has headroom.  Shrink the tile until it fits.
    budget = max(vmem_cap // 3, 8 << 20)
    tile = _round_up(min(token_tile, max(n_tokens, 8)), 8)
    while tile > 8 and 4 * tile * d_model * itemsize > budget:
        tile = _round_up(tile // 2, 8)

    n_padded = _round_up(n_tokens, tile)
    if n_padded != n_tokens:
        ids = jnp.pad(ids, (0, n_padded - n_tokens))

    # Resident path keeps 2 copies of the table (pipeline double buffer) plus
    # the output blocks; cap at ~1/4 of VMEM (32 MiB on v5e/v6e, 16 MiB on
    # v7x).  (pl.Buffered(1) on the table spec would halve this; left off for
    # lowering portability.)
    resident_table_cap = min(vmem_cap // 4, 32 << 20)
    use_resident = (
        not force_gather
        and vocab <= _RESIDENT_MAX_VOCAB
        and table_bytes <= resident_table_cap
    )

    if use_resident:
        vmem_limit = min(
            vmem_cap,
            2 * table_bytes + 2 * tile * d_model * itemsize + (8 << 20))
        out_flat = _embedding_resident(ids, table, tile=tile, scale=scale,
                                       vmem_limit=vmem_limit)
    else:
        vmem_limit = min(
            vmem_cap, 4 * tile * d_model * itemsize + (8 << 20))
        out_flat = _embedding_gather(ids, table, tile=tile, scale=scale,
                                     vmem_limit=vmem_limit)

    if n_padded != n_tokens:
        out_flat = out_flat[:n_tokens]
    return out_flat.reshape(*orig_shape, d_model)


if __name__ == "__main__":
    # Small, deterministic setup consistent with the module's forward.
    d_model = 128
    vocab = 50
    B, S = 2, 8

    key = jax.random.PRNGKey(0)
    k_tab, k_ids = jax.random.split(key)

    # nn.Embedding default init: N(0, 1).
    table = jax.random.normal(k_tab, (vocab, d_model), dtype=jnp.float32)
    x = jax.random.randint(k_ids, (B, S), 0, vocab, dtype=jnp.int32)

    ref = table[x] * math.sqrt(d_model)

    # Small-vocab fast path (table resident in VMEM, one-hot MXU gather).
    out_fast = jax.block_until_ready(embedding_forward(x, table))
    assert out_fast.shape == (B, S, d_model), out_fast.shape
    assert jnp.allclose(out_fast, ref, atol=1e-4, rtol=1e-5), "resident path mismatch"

    # Large-vocab path (manual row-gather DMAs from HBM, double-buffered
    # across grid steps), forced for testing.  token_tile=8 gives a 2-step
    # grid so the cross-step prefetch path is actually exercised.
    out_gather = jax.block_until_ready(
        embedding_forward(x, table, token_tile=8, force_gather=True)
    )
    assert out_gather.shape == (B, S, d_model), out_gather.shape
    assert jnp.allclose(out_gather, ref, atol=1e-6, rtol=1e-6), "gather path mismatch"

    print("KERNEL_OK")
</pallas_src>

<mosaic_0001>
module attributes {stable_mosaic.version = 11 : i64} {
  func.func @_resident_kernel(%arg0: i32, %arg1: memref<16x1xi32, #tpu.memory_space<vmem>>, %arg2: memref<50x128xf32, #tpu.memory_space<vmem>>, %arg3: memref<16x128xf32, #tpu.memory_space<vmem>>) attributes {dimension_semantics = [#tpu.dimension_semantics<parallel>], iteration_bounds = array<i64: 1>, scalar_prefetch = 0 : i64, scratch_operands = 0 : i64, tpu.core_type = #tpu.core_type<tc>, window_params = [{transform_indices = @transform_0, window_bounds = array<i64: 16, 1>}, {pipeline_mode = #tpu.pipeline_mode<synchronous>, transform_indices = @transform_1, window_bounds = array<i64: 50, 128>}, {transform_indices = @transform_2, window_bounds = array<i64: 16, 128>}]} {
    %0 = tpu.iota {dimensions = array<i32: 1>} : vector<16x50xi32>
    %c0 = arith.constant 0 : index
    %c0_0 = arith.constant 0 : index
    %1 = vector.load %arg1[%c0, %c0_0] : memref<16x1xi32, #tpu.memory_space<vmem>>, vector<16x1xi32>
    %2 = vector.broadcast %1 : vector<16x1xi32> to vector<16x50xi32>
    %3 = arith.cmpi eq, %2, %0 : vector<16x50xi32>
    %4 = arith.extui %3 : vector<16x50xi1> to vector<16x50xi32>
    %5 = arith.sitofp %4 : vector<16x50xi32> to vector<16x50xf32>
    %c0_1 = arith.constant 0 : index
    %c0_2 = arith.constant 0 : index
    %6 = vector.load %arg2[%c0_1, %c0_2] : memref<50x128xf32, #tpu.memory_space<vmem>>, vector<50x128xf32>
    %cst = arith.constant dense<0.000000e+00> : vector<16x128xf32>
    %7 = tpu.matmul %5, %6, %cst {dimension_numbers = #tpu.dot_dimension_numbers<[1], [0], [0], [1], [0, 0, 1, 1], [], []>} : vector<16x50xf32>, vector<50x128xf32>, vector<16x128xf32> -> vector<16x128xf32>
    %cst_3 = arith.constant 11.3137083 : f32
    %8 = vector.broadcast %cst_3 : f32 to vector<16x128xf32>
    %9 = arith.mulf %7, %8 : vector<16x128xf32>
    %c0_4 = arith.constant 0 : index
    %c0_5 = arith.constant 0 : index
    %10 = vector.load %arg3[%c0_4, %c0_5] : memref<16x128xf32, #tpu.memory_space<vmem>>, vector<16x128xf32>
    tpu.vector_store %arg3[%c0_4, %c0_5], %9 {strides = array<i32>} : memref<16x128xf32, #tpu.memory_space<vmem>>, vector<16x128xf32>,
    return
  }
  func.func @transform_0(%arg0: i32) -> (i32, i32) {
    %c0_i32 = arith.constant 0 : i32
    %c0_i32_0 = arith.constant 0 : i32
    return %arg0, %c0_i32 : i32, i32
  }
  func.func @transform_1(%arg0: i32) -> (i32, i32) {
    %c0_i32 = arith.constant 0 : i32
    %c0_i32_0 = arith.constant 0 : i32
    %c0_i32_1 = arith.constant 0 : i32
    return %c0_i32, %c0_i32_0 : i32, i32
  }
  func.func @transform_2(%arg0: i32) -> (i32, i32) {
    %c0_i32 = arith.constant 0 : i32
    %c0_i32_0 = arith.constant 0 : i32
    return %arg0, %c0_i32 : i32, i32
  }
}

</mosaic_0001>

<llo_original>
// kernel: tpu_custom_call.1
$region0: #{tpu_custom_call.1}
  #allocation0 [shape = 'u32[]', space=smem, size = 0x4, offset = 0x4, fixed_abs, tag = 'smem constant byte address 0x4 - core index']
  #allocation1 [shape = 'u32[144,128]{1,0:T(1,128)}', space=vmem, size = 0x12000, scoped, tag = 'internal scratch']
  %s0 = inlined_call_operand.vmem [shape: s32[16,1], index: 0, kind: input, shape index: {}]
  %s1 = inlined_call_operand.hbm [shape: f32[50,128], index: 1, kind: input, shape index: {}]
  %s2 = inlined_call_operand.hbm [shape: f32[16,128], index: 2, kind: output, shape index: {}]
  %s3 = sld [smem:[#allocation0]]
  $region22: #{tpu_custom_call.1} parent=0
    _
  %s5 = ssub.s32 1, %s3
  %s6 = scalar_select 0, %s5, %s3
  $region1: #{tpu_custom_call.1} parent=0
    #allocation2 [shape = 'u8[28672]{0}', space=vmem, size = 0x7000, scoped, tag = 'input window, operand 1, single buffered']
    #allocation3 [shape = 's32[1]{0}', space=sflag, size = 0x4, scoped, tag = 'scoped memory for tpu_custom_call.1']
    #allocation4 [shape = 's32[1]{0}', space=sflag, size = 0x4, scoped, tag = 'scoped memory for tpu_custom_call.1']
    #allocation5 [shape = 'u8[8192]{0}', space=vmem, size = 0x2000, scoped, tag = 'output window, operand 0, single buffered']
    %7 = vsyncpa [#allocation3], 0
    %8 = vsyncpa [#allocation4], 0
    // Predicated region
    $region2: #{tpu_custom_call.1} parent=1 // pred_check
      _
    $region3: #{tpu_custom_call.1} parent=1 // pred_check_branch
      %10 = sbr.rel (0) target = $region5
    $region4: #{tpu_custom_call.1} parent=1 // pred_region
      _
    $region5: #{tpu_custom_call.1} parent=1 // pred_fallthru
      _
    // Predicated region
    $region6: #{tpu_custom_call.1} parent=1 // pred_check
      _
    $region7: #{tpu_custom_call.1} parent=1 // pred_check_branch
      %12 = sbr.rel (0) target = $region9
    $region8: #{tpu_custom_call.1} parent=1 // pred_region
      %s14 = ssub.s32 896, 896
      %15 = vsyncadd [#allocation3], %s14
      %s16 = sshll.u32 [#allocation2], 4
      %s17 = int_to_ptr.vmem [resolvable:$true] %s16
      %22 = dma.hbm_to_vmem [thread:$0]  %s1, 896, %s17, [#allocation3], 128, 128, 8
    $region9: #{tpu_custom_call.1} parent=1 // pred_fallthru
      _
    // Predicated region
    $region10: #{tpu_custom_call.1} parent=1 // pred_check
      _
    $region11: #{tpu_custom_call.1} parent=1 // pred_check_branch
      %24 = sbr.rel (0) target = $region13
    $region12: #{tpu_custom_call.1} parent=1 // pred_region
      %25 = dma.done [#allocation3], 896
    $region13: #{tpu_custom_call.1} parent=1 // pred_fallthru
      _
    %v26 = vlaneseq
    %v27 = vand.u32 %v26, 127
    %v28 = vld [vmem:[%s0] sm:$0xff]
    %v29 = vld [vmem:[%s0 + $0x8] sm:$0xff]
    %30 = vset.pattern.permute.xlu0 0
    %31 = vperm.xlu0 %30, %v28
    %v32 = vpop.permute.xlu0 %31
    %33 = vset.pattern.permute.xlu0 0
    %34 = vperm.xlu0 %33, %v29
    %v35 = vpop.permute.xlu0 %34
    %vm36 = vcmp.eq.s32.totalorder %v32, %v27
    %vm37 = vcmp.eq.s32.totalorder %v35, %v27
    %v38 = vsel %vm36, 1, 0
    %v39 = vsel %vm37, 1, 0
    %v40 = vcvt.s32.f32 %v38
    %v41 = vcvt.s32.f32 %v39
    %v42 = vld [vmem:[#allocation2] sm:$0xff]
    %v43 = vld [vmem:[#allocation2 + $0x8] sm:$0xff]
    %v44 = vld [vmem:[#allocation2 + $0x10] sm:$0xff]
    %v45 = vld [vmem:[#allocation2 + $0x18] sm:$0xff]
    %v46 = vld [vmem:[#allocation2 + $0x20] sm:$0xff]
    %v47 = vld [vmem:[#allocation2 + $0x28] sm:$0xff]
    %v48 = vld [vmem:[#allocation2 + $0x30] sm:$0x3]
    %vm49 = vcmask 408576
    %v51 = vsel %vm49, %v40, 0
    %v54 = vsel %vm49, %v41, 0
    %vm56 = vcmask 1041408
    %v58 = vsel %vm56, %v48, 0
    %60 = vmatprep.subr.mxu0 0.0
    %61 = vmatpush1.msra.mxu0 %v42
    %62 = vmatprep.subr.mxu0 0.0
    %63 = vmatpush1.msra.mxu0 %v43
    %64 = vmatprep.subr.mxu0 0.0
    %65 = vmatpush1.msra.mxu0 %v44
    %66 = vmatprep.subr.mxu0 0.0
    %67 = vmatpush1.msra.mxu0 %v45
    %68 = vmatprep.subr.mxu0 0.0
    %69 = vmatpush1.msra.mxu0 %v46
    %70 = vmatprep.subr.mxu0 0.0
    %71 = vmatpush1.msra.mxu0 %v47
    %72 = vmatprep.subr.mxu0 0.0
    %73 = vmatpush1.msra.mxu0 %v58
    %74 = vmatprep.subr.mxu0 0.0
    %75 = vmatpush1.msra.mxu0 0.0
    %76 = vmatprep.subr.mxu0 0.0
    %77 = vmatpush1.msra.mxu0 0.0
    %78 = vmatprep.subr.mxu0 0.0
    %79 = vmatpush1.msra.mxu0 0.0
    %80 = vmatprep.subr.mxu0 0.0
    %81 = vmatpush1.msra.mxu0 0.0
    %82 = vmatprep.subr.mxu0 0.0
    %83 = vmatpush1.msra.mxu0 0.0
    %84 = vmatprep.subr.mxu0 0.0
    %85 = vmatpush1.msra.mxu0 0.0
    %86 = vmatprep.subr.mxu0 0.0
    %87 = vmatpush1.msra.mxu0 0.0
    %88 = vmatprep.subr.mxu0 0.0
    %89 = vmatpush1.msra.mxu0 0.0
    %90 = vmatprep.subr.mxu0 0.0
    %91 = vmatpush1.msra.mxu0 0.0
    %92 = vmatprep.subr.mxu0 0.0
    %93 = vmatpush1.msra.mxu0 0.0
    %94 = vmatprep.subr.mxu0 0.0
    %95 = vmatpush1.msra.mxu0 0.0
    %96 = vmatprep.subr.mxu0 0.0
    %97 = vmatpush1.msra.mxu0 0.0
    %98 = vmatprep.subr.mxu0 0.0
    %99 = vmatpush1.msra.mxu0 0.0
    %100 = vmatprep.subr.mxu0 0.0
    %101 = vmatpush1.msra.mxu0 0.0
    %102 = vmatprep.subr.mxu0 0.0
    %103 = vmatpush1.msra.mxu0 0.0
    %104 = vmatprep.subr.mxu0 0.0
    %105 = vmatpush1.msra.mxu0 0.0
    %106 = vmatprep.subr.mxu0 0.0
    %107 = vmatpush1.msra.mxu0 0.0
    %108 = vmatprep.subr.mxu0 0.0
    %109 = vmatpush1.msra.mxu0 0.0
    %110 = vmatprep.subr.mxu0 0.0
    %111 = vmatpush1.msra.mxu0 0.0
    %112 = vmatprep.subr.mxu0 0.0
    %113 = vmatpush1.msra.mxu0 0.0
    %114 = vmatprep.subr.mxu0 0.0
    %115 = vmatpush1.msra.mxu0 0.0
    %116 = vmatprep.subr.mxu0 0.0
    %117 = vmatpush1.msra.mxu0 0.0
    %118 = vmatprep.subr.mxu0 0.0
    %119 = vmatpush1.msra.mxu0 0.0
    %120 = vmatprep.subr.mxu0 0.0
    %121 = vmatpush1.msra.mxu0 0.0
    %122 = vmatprep.subr.mxu0 0.0
    %123 = vmatpush1.msra.mxu0 0.0
    %124 = vmatprep.mubr.f32.mxu0 0.0
    %125 = vmatmul.mubr.f32.gmra.mrb[0].mxu0 %v51
    %v126 = vpop.f32.mrb[0].mxu0
    %v127 = vadd.f32 0.0, %v126
    %v128 = vpop.f32.mrb[0].mxu0
    %129 = vmatprep.mubr.f32.mxu0 0.0
    %130 = vmatmul.mubr.f32.gmra.mrb[0].mxu0 %v54
    %v131 = vpop.f32.mrb[0].mxu0
    %v132 = vadd.f32 0.0, %v131
    %v133 = vpop.f32.mrb[0].mxu0
    %134 = vdwg.mxu0
    %v135 = vmul.f32 %v127, 11.313708
    %v136 = vmul.f32 %v132, 11.313708
    %137 = vst [vmem:[#allocation5] sm:$0xff] %v135
    %138 = vst [vmem:[#allocation5 + $0x8] sm:$0xff] %v136
    // Predicated region
    $region14: #{tpu_custom_call.1} parent=1 // pred_check
      _
    $region15: #{tpu_custom_call.1} parent=1 // pred_check_branch
      %140 = sbr.rel (0) target = $region17
    $region16: #{tpu_custom_call.1} parent=1 // pred_region
      %s142 = ssub.s32 256, 256
      %143 = vsyncadd [#allocation4], %s142
      %s144 = sshll.u32 [#allocation5], 4
      %s145 = int_to_ptr.vmem [resolvable:$true] %s144
      %150 = dma.vmem_to_hbm [thread:$0]  %s145, 256, %s2, [#allocation4], 128, 128, 8
    $region17: #{tpu_custom_call.1} parent=1 // pred_fallthru
      _
    // Predicated region
    $region18: #{tpu_custom_call.1} parent=1 // pred_check
      _
    $region19: #{tpu_custom_call.1} parent=1 // pred_check_branch
      %152 = sbr.rel (0) target = $region21
    $region20: #{tpu_custom_call.1} parent=1 // pred_region
      %153 = dma.done [#allocation4], 256
    $region21: #{tpu_custom_call.1} parent=1 // pred_fallthru
      _
    %154 = vsyncpa [#allocation3], 1
    %155 = vsyncpa [#allocation4], 1

</llo_original>
